<compile_context>
chip_gen: v7x
topology: tpu7x:2x2x1
jax: 0.10.0
libtpu: 0.0.40
codegen_flags: <defaults>
</compile_context>

<pallas_src>
import functools

import jax
import jax.numpy as jnp
from jax.experimental import pallas as pl
from jax.experimental.pallas import tpu as pltpu

MIN_VAL = 1.41421   # module's ReLU6(min_value=...) -> lower clamp bound
MAX_VAL = 6.0       # ReLU6 upper bound
# TODO(synk): torch.nn.ReLU6 has no `min_value` argument; keeping the original
# interpretation clip(x, 1.41421, 6.0) (Hardtanh-style), as in the reference.


def relu6_conv_kernel(x_ref, w_ref, b_ref, o_ref, *, H, W, KH, KW):
    """One batch chunk per grid step (clamp + taps-as-rolls + one MXU dot/image).

    x_ref: (NB, Cin, H*W)     VMEM; NCHW with spatial flattened on the lane axis.
    w_ref: (Cout, KH*KW*Cin)  VMEM; columns ordered tap-major (i, j) then channel.
    b_ref: (Cout, 1)          VMEM bias column.
    o_ref: (NB, Cout, H*W)    VMEM; full-plane result, wrapper slices the valid
                              (Ho, Wo) region afterwards.
    """
    HW = H * W
    NB = x_ref.shape[0]

    # Elementwise clamp (the "ReLU6 with custom min") on the lane-dense planes.
    x = jnp.clip(x_ref[...], MIN_VAL, MAX_VAL)            # (NB, Cin, HW) f32
    w2d = w_ref[...]                                      # (Cout, KH*KW*Cin)
    bias = b_ref[...]                                      # (Cout, 1)

    for n in range(NB):                                    # NB is static -> unrolled
        xi = x[n]                                          # (Cin, HW)
        # Tap (i, j): output flat position p = y*W + xcol reads x[:, p + i*W + j].
        # Realize each tap as a full-plane lane roll (XLU). Wrapped and
        # cross-row-bleed values land only in the invalid (y >= Ho or
        # xcol >= Wo) positions, discarded by the wrapper slice.
        # NOTE: this holds only for stride=1 'VALID' convolution (no padding,
        # no dilation).
        taps = []
        for i in range(KH):
            for j in range(KW):
                d = i * W + j
                taps.append(xi if d == 0 else pltpu.roll(xi, shift=HW - d, axis=1))
        stacked = jnp.concatenate(taps, axis=0)            # (KH*KW*Cin, HW)

        # Single small MXU matmul replaces 140 scalar broadcast MACs.
        acc = jnp.dot(w2d, stacked,
                      preferred_element_type=jnp.float32)  # (Cout, HW)
        o_ref[n] = (acc + bias).astype(o_ref.dtype)        # lane-dense store


def model_forward(x_nchw, w_oihw, bias, *, images_per_step=None):
    """x_nchw: (N, Cin, H, W) f32; w_oihw: (Cout, Cin, KH, KW); bias: (Cout,)."""
    N, Cin, H, W = x_nchw.shape
    Cout, Cin2, KH, KW = w_oihw.shape
    assert Cin2 == Cin
    Ho, Wo = H - KH + 1, W - KW + 1
    HW = H * W

    # One grid step handles NB images.  Default: whole batch in one step
    # (per-step pipeline overhead ~0.35us dominates this tiny kernel on the
    # single-TC v5e/v6e).  On v7x with larger N, pass images_per_step=N//2 so
    # each TensorCore takes one chunk via the "parallel" grid axis.
    NB = N if images_per_step is None else images_per_step
    assert N % NB == 0, "images_per_step must divide the batch size"
    G = N // NB

    x_flat = x_nchw.reshape(N, Cin, HW)            # pure reshape, no transpose
    # Weight columns ordered tap-major then input channel, matching the kernel's
    # tap stacking: w2d[o, (i*KW + j)*Cin + ci] = w_oihw[o, ci, i, j].
    w2d = jnp.transpose(w_oihw, (0, 2, 3, 1)).reshape(Cout, KH * KW * Cin)
    b2d = bias.reshape(Cout, 1)

    kernel = functools.partial(relu6_conv_kernel, H=H, W=W, KH=KH, KW=KW)

    cost = pl.CostEstimate(
        flops=2 * N * Cout * Cin * KH * KW * HW,
        transcendentals=0,
        bytes_accessed=4 * (x_flat.size + N * Cout * HW + w2d.size + b2d.size),
    )

    out_flat = pl.pallas_call(
        kernel,
        out_shape=jax.ShapeDtypeStruct((N, Cout, HW), x_nchw.dtype),
        grid=(G,),
        in_specs=[
            pl.BlockSpec((NB, Cin, HW), lambda g: (g, 0, 0)),
            pl.BlockSpec((Cout, KH * KW * Cin), lambda g: (0, 0)),  # resident
            pl.BlockSpec((Cout, 1), lambda g: (0, 0)),              # resident
        ],
        out_specs=pl.BlockSpec((NB, Cout, HW), lambda g: (g, 0, 0)),
        compiler_params=pltpu.CompilerParams(
            dimension_semantics=("parallel",)),
        cost_estimate=cost,
    )(x_flat, w2d, b2d)

    # Valid conv outputs live at full-plane flat index y*W + xcol with
    # y < Ho, xcol < Wo.  (Single small slice; kept outside the kernel so the
    # kernel's stores stay lane-dense.)
    return out_flat.reshape(N, Cout, H, W)[:, :, :Ho, :Wo]


def _reference(x_nchw, w_oihw, bias):
    v1 = jnp.clip(x_nchw, MIN_VAL, MAX_VAL)
    v2 = jax.lax.conv_general_dilated(
        v1, w_oihw, window_strides=(1, 1), padding="VALID",
        dimension_numbers=("NCHW", "OIHW", "NCHW"))
    return v2 + bias[None, :, None, None]


if __name__ == "__main__":
    # Small shapes consistent with the module: Cin=5, Cout=7, k=2; spatial 16x16,
    # batch=2.
    key = jax.random.PRNGKey(0)
    kx, kw, kb = jax.random.split(key, 3)

    N, Cin, H, W = 2, 5, 16, 16
    Cout, KH, KW = 7, 2, 2

    x1 = jax.random.normal(kx, (N, Cin, H, W), dtype=jnp.float32)
    # Deterministic Conv2d parameters (Kaiming-uniform-ish bound like PyTorch default).
    fan_in = Cin * KH * KW
    bound = 1.0 / (fan_in ** 0.5)
    w = jax.random.uniform(kw, (Cout, Cin, KH, KW), jnp.float32, -bound, bound)
    b = jax.random.uniform(kb, (Cout,), jnp.float32, -bound, bound)

    out = model_forward(x1, w, b)
    out = jax.block_until_ready(out)

    ref = _reference(x1, w, b)
    assert out.shape == (N, Cout, H - KH + 1, W - KW + 1)
    assert jnp.allclose(out, ref, atol=1e-4, rtol=1e-4), \
        float(jnp.max(jnp.abs(out - ref)))

    print("KERNEL_OK")
</pallas_src>

<mosaic_0001>
module attributes {stable_mosaic.version = 11 : i64} {
  func.func @relu6_conv_kernel(%arg0: i32, %arg1: memref<2x5x256xf32, #tpu.memory_space<vmem>>, %arg2: memref<7x20xf32, #tpu.memory_space<vmem>>, %arg3: memref<7x1xf32, #tpu.memory_space<vmem>>, %arg4: memref<2x7x256xf32, #tpu.memory_space<vmem>>) attributes {dimension_semantics = [#tpu.dimension_semantics<parallel>], iteration_bounds = array<i64: 1>, scalar_prefetch = 0 : i64, scratch_operands = 0 : i64, tpu.core_type = #tpu.core_type<tc>, window_params = [{transform_indices = @transform_0, window_bounds = array<i64: 2, 5, 256>}, {pipeline_mode = #tpu.pipeline_mode<synchronous>, transform_indices = @transform_1, window_bounds = array<i64: 7, 20>}, {pipeline_mode = #tpu.pipeline_mode<synchronous>, transform_indices = @transform_2, window_bounds = array<i64: 7, 1>}, {transform_indices = @transform_3, window_bounds = array<i64: 2, 7, 256>}]} {
    %c0 = arith.constant 0 : index
    %c0_0 = arith.constant 0 : index
    %c0_1 = arith.constant 0 : index
    %0 = vector.load %arg1[%c0, %c0_0, %c0_1] : memref<2x5x256xf32, #tpu.memory_space<vmem>>, vector<2x5x256xf32>
    %cst = arith.constant 1.414210e+00 : f32
    %cst_2 = arith.constant 6.000000e+00 : f32
    %1 = vector.broadcast %cst : f32 to vector<2x5x256xf32>
    %2 = arith.maximumf %1, %0 : vector<2x5x256xf32>
    %3 = vector.broadcast %cst_2 : f32 to vector<2x5x256xf32>
    %4 = arith.minimumf %3, %2 : vector<2x5x256xf32>
    %c0_3 = arith.constant 0 : index
    %c0_4 = arith.constant 0 : index
    %5 = vector.load %arg2[%c0_3, %c0_4] : memref<7x20xf32, #tpu.memory_space<vmem>>, vector<7x20xf32>
    %c0_5 = arith.constant 0 : index
    %c0_6 = arith.constant 0 : index
    %6 = vector.load %arg3[%c0_5, %c0_6] : memref<7x1xf32, #tpu.memory_space<vmem>>, vector<7x1xf32>
    %7 = vector.extract_strided_slice %4 {offsets = [0, 0, 0], sizes = [1, 5, 256], strides = [1, 1, 1]} : vector<2x5x256xf32> to vector<1x5x256xf32>
    %8 = vector.shape_cast %7 : vector<1x5x256xf32> to vector<5x256xf32>
    %c255_i32 = arith.constant 255 : i32
    %9 = tpu.dynamic_rotate %8 by %c255_i32 dim 1 : vector<5x256xf32>, i32 -> vector<5x256xf32>
    %c240_i32 = arith.constant 240 : i32
    %10 = tpu.dynamic_rotate %8 by %c240_i32 dim 1 : vector<5x256xf32>, i32 -> vector<5x256xf32>
    %c239_i32 = arith.constant 239 : i32
    %11 = tpu.dynamic_rotate %8 by %c239_i32 dim 1 : vector<5x256xf32>, i32 -> vector<5x256xf32>
    %12 = tpu.concatenate %8, %9, %10, %11 in 0 : vector<5x256xf32>, vector<5x256xf32>, vector<5x256xf32>, vector<5x256xf32> -> vector<20x256xf32>
    %cst_7 = arith.constant dense<0.000000e+00> : vector<7x256xf32>
    %13 = tpu.matmul %5, %12, %cst_7 {dimension_numbers = #tpu.dot_dimension_numbers<[1], [0], [0], [1], [0, 0, 1, 1], [], []>} : vector<7x20xf32>, vector<20x256xf32>, vector<7x256xf32> -> vector<7x256xf32>
    %14 = vector.broadcast %6 : vector<7x1xf32> to vector<7x256xf32>
    %15 = arith.addf %13, %14 : vector<7x256xf32>
    %c0_8 = arith.constant 0 : index
    %c0_9 = arith.constant 0 : index
    %c0_10 = arith.constant 0 : index
    %16 = vector.load %arg4[%c0_8, %c0_9, %c0_10] : memref<2x7x256xf32, #tpu.memory_space<vmem>>, vector<1x7x256xf32>
    %17 = vector.shape_cast %16 : vector<1x7x256xf32> to vector<7x256xf32>
    %18 = vector.shape_cast %15 : vector<7x256xf32> to vector<1x7x256xf32>
    tpu.vector_store %arg4[%c0_8, %c0_9, %c0_10], %18 {strides = array<i32>} : memref<2x7x256xf32, #tpu.memory_space<vmem>>, vector<1x7x256xf32>,
    %19 = vector.extract_strided_slice %4 {offsets = [1, 0, 0], sizes = [1, 5, 256], strides = [1, 1, 1]} : vector<2x5x256xf32> to vector<1x5x256xf32>
    %20 = vector.shape_cast %19 : vector<1x5x256xf32> to vector<5x256xf32>
    %c255_i32_11 = arith.constant 255 : i32
    %21 = tpu.dynamic_rotate %20 by %c255_i32_11 dim 1 : vector<5x256xf32>, i32 -> vector<5x256xf32>
    %c240_i32_12 = arith.constant 240 : i32
    %22 = tpu.dynamic_rotate %20 by %c240_i32_12 dim 1 : vector<5x256xf32>, i32 -> vector<5x256xf32>
    %c239_i32_13 = arith.constant 239 : i32
    %23 = tpu.dynamic_rotate %20 by %c239_i32_13 dim 1 : vector<5x256xf32>, i32 -> vector<5x256xf32>
    %24 = tpu.concatenate %20, %21, %22, %23 in 0 : vector<5x256xf32>, vector<5x256xf32>, vector<5x256xf32>, vector<5x256xf32> -> vector<20x256xf32>
    %cst_14 = arith.constant dense<0.000000e+00> : vector<7x256xf32>
    %25 = tpu.matmul %5, %24, %cst_14 {dimension_numbers = #tpu.dot_dimension_numbers<[1], [0], [0], [1], [0, 0, 1, 1], [], []>} : vector<7x20xf32>, vector<20x256xf32>, vector<7x256xf32> -> vector<7x256xf32>
    %26 = vector.broadcast %6 : vector<7x1xf32> to vector<7x256xf32>
    %27 = arith.addf %25, %26 : vector<7x256xf32>
    %c1 = arith.constant 1 : index
    %c0_15 = arith.constant 0 : index
    %c0_16 = arith.constant 0 : index
    %28 = vector.load %arg4[%c1, %c0_15, %c0_16] : memref<2x7x256xf32, #tpu.memory_space<vmem>>, vector<1x7x256xf32>
    %29 = vector.shape_cast %28 : vector<1x7x256xf32> to vector<7x256xf32>
    %30 = vector.shape_cast %27 : vector<7x256xf32> to vector<1x7x256xf32>
    tpu.vector_store %arg4[%c1, %c0_15, %c0_16], %30 {strides = array<i32>} : memref<2x7x256xf32, #tpu.memory_space<vmem>>, vector<1x7x256xf32>,
    return
  }
  func.func @transform_0(%arg0: i32) -> (i32, i32, i32) {
    %c0_i32 = arith.constant 0 : i32
    %c0_i32_0 = arith.constant 0 : i32
    %c0_i32_1 = arith.constant 0 : i32
    return %arg0, %c0_i32, %c0_i32_0 : i32, i32, i32
  }
  func.func @transform_1(%arg0: i32) -> (i32, i32) {
    %c0_i32 = arith.constant 0 : i32
    %c0_i32_0 = arith.constant 0 : i32
    %c0_i32_1 = arith.constant 0 : i32
    return %c0_i32, %c0_i32_0 : i32, i32
  }
  func.func @transform_2(%arg0: i32) -> (i32, i32) {
    %c0_i32 = arith.constant 0 : i32
    %c0_i32_0 = arith.constant 0 : i32
    %c0_i32_1 = arith.constant 0 : i32
    return %c0_i32, %c0_i32_0 : i32, i32
  }
  func.func @transform_3(%arg0: i32) -> (i32, i32, i32) {
    %c0_i32 = arith.constant 0 : i32
    %c0_i32_0 = arith.constant 0 : i32
    %c0_i32_1 = arith.constant 0 : i32
    return %arg0, %c0_i32, %c0_i32_0 : i32, i32, i32
  }
}

</mosaic_0001>

<llo_original>
// kernel: tpu_custom_call.1
$region0: #{tpu_custom_call.1}
  #allocation0 [shape = 'u32[]', space=smem, size = 0x4, offset = 0x4, fixed_abs, tag = 'smem constant byte address 0x4 - core index']
  #allocation1 [shape = 'u32[144,128]{1,0:T(1,128)}', space=vmem, size = 0x12000, scoped, tag = 'internal scratch']
  %s0 = inlined_call_operand.vmem [shape: f32[2,5,256], index: 0, kind: input, shape index: {}]
  %s1 = inlined_call_operand.vmem [shape: f32[7,20], index: 1, kind: input, shape index: {}]
  %s2 = inlined_call_operand.vmem [shape: f32[7,1], index: 2, kind: input, shape index: {}]
  %s3 = inlined_call_operand.vmem [shape: f32[2,7,256], index: 3, kind: output, shape index: {}]
  %s4 = sld [smem:[#allocation0]]
  $region22: #{tpu_custom_call.1} parent=0
    _
  %s6 = ssub.s32 1, %s4
  %s7 = scalar_select 0, %s6, %s4
  // Predicated region
  $region2: #{tpu_custom_call.1} parent=0 // pred_check
    _
  $region3: #{tpu_custom_call.1} parent=0 // pred_check_branch
    %9 = sbr.rel (0) target = $region5
  $region4: #{tpu_custom_call.1} parent=0 // pred_region
    _
  $region5: #{tpu_custom_call.1} parent=0 // pred_fallthru
    _
  // Predicated region
  $region6: #{tpu_custom_call.1} parent=0 // pred_check
    _
  $region7: #{tpu_custom_call.1} parent=0 // pred_check_branch
    %11 = sbr.rel (0) target = $region9
  $region8: #{tpu_custom_call.1} parent=0 // pred_region
    _
  $region9: #{tpu_custom_call.1} parent=0 // pred_fallthru
    _
  // Predicated region
  $region10: #{tpu_custom_call.1} parent=0 // pred_check
    _
  $region11: #{tpu_custom_call.1} parent=0 // pred_check_branch
    %13 = sbr.rel (0) target = $region13
  $region12: #{tpu_custom_call.1} parent=0 // pred_region
    _
  $region13: #{tpu_custom_call.1} parent=0 // pred_fallthru
    _
  %v14 = vld [vmem:[%s0] sm:$0x1f]
  %v15 = vld [vmem:[%s0 + $0x8] sm:$0x1f]
  %v16 = vld [vmem:[%s0 + $0x10] sm:$0x1f]
  %v17 = vld [vmem:[%s0 + $0x18] sm:$0x1f]
  %v18 = vmax.f32 %v14, 1.41421
  %v19 = vmax.f32 %v15, 1.41421
  %v20 = vmax.f32 %v16, 1.41421
  %v21 = vmax.f32 %v17, 1.41421
  %v22 = vmin.f32 %v18, 6.0
  %v23 = vmin.f32 %v19, 6.0
  %v24 = vmin.f32 %v20, 6.0
  %v25 = vmin.f32 %v21, 6.0
  %v26 = vld [vmem:[%s1] sm:$0x7f]
  %v27 = vld [vmem:[%s2] sm:$0x7f]
  %28 = vrot.lane.b32.xlu0 %v22, 127
  %v29 = vpop.permute.xlu0 %28
  %30 = vrot.lane.b32.xlu0 %v23, 127
  %v31 = vpop.permute.xlu0 %30
  %v32 = vlaneseq
  %v33 = vand.u32 %v32, 127
  %vm34 = vcmp.lt.s32.totalorder %v33, 127
  %v35 = vsel %vm34, %v29, %v31
  %v36 = vsel %vm34, %v31, %v29
  %37 = vrot.lane.b32.xlu0 %v22, 112
  %v38 = vpop.permute.xlu0 %37
  %39 = vrot.lane.b32.xlu0 %v23, 112
  %v40 = vpop.permute.xlu0 %39
  %vm41 = vcmp.lt.s32.totalorder %v33, 112
  %v42 = vsel %vm41, %v38, %v40
  %v43 = vsel %vm41, %v40, %v38
  %44 = vrot.lane.b32.xlu0 %v22, 111
  %v45 = vpop.permute.xlu0 %44
  %46 = vrot.lane.b32.xlu0 %v23, 111
  %v47 = vpop.permute.xlu0 %46
  %vm48 = vcmp.lt.s32.totalorder %v33, 111
  %v49 = vsel %vm48, %v45, %v47
  %v50 = vsel %vm48, %v47, %v45
  %v53 = vrot.slane %v35, 3
  %v54 = vrot.slane %v36, 3
  %v59 = vrot.slane %v42, 6
  %v60 = vrot.slane %v43, 6
  %v65 = vrot.slane %v49, 1
  %v66 = vrot.slane %v50, 1
  %vm69 = vcmask 1044480
  %v70 = vsel %vm69, %v22, %v53
  %v71 = vsel %vm69, %v23, %v54
  %vm72 = vcmask 1041408
  %v73 = vsel %vm72, %v53, %v59
  %v74 = vsel %vm72, %v54, %v60
  %vm75 = vcmask 1046528
  %v76 = vsel %vm75, %v73, %v65
  %v77 = vsel %vm75, %v74, %v66
  %79 = vset.pattern.permute.xlu0 0
  %80 = vperm.xlu0 %79, %v27
  %v81 = vpop.permute.xlu0 %80
  %vm83 = vcmask 162816
  %v85 = vsel %vm83, %v26, 0
  %vm87 = vcmask 1043456
  %v88 = vsel %vm87, %v65, 0
  %v90 = vsel %vm87, %v66, 0
  %92 = vmatprep.subr.mxu0 %v71
  %93 = vmatpush1.msra.mxu0 %v70
  %94 = vmatprep.subr.mxu0 %v77
  %95 = vmatpush1.msra.mxu0 %v76
  %96 = vmatprep.subr.mxu0 %v90
  %97 = vmatpush1.msra.mxu0 %v88
  %98 = vmatprep.subr.mxu0 0.0
  %99 = vmatpush1.msra.mxu0 0.0
  %100 = vmatprep.subr.mxu0 0.0
  %101 = vmatpush1.msra.mxu0 0.0
  %102 = vmatprep.subr.mxu0 0.0
  %103 = vmatpush1.msra.mxu0 0.0
  %104 = vmatprep.subr.mxu0 0.0
  %105 = vmatpush1.msra.mxu0 0.0
  %106 = vmatprep.subr.mxu0 0.0
  %107 = vmatpush1.msra.mxu0 0.0
  %108 = vmatprep.subr.mxu0 0.0
  %109 = vmatpush1.msra.mxu0 0.0
  %110 = vmatprep.subr.mxu0 0.0
  %111 = vmatpush1.msra.mxu0 0.0
  %112 = vmatprep.subr.mxu0 0.0
  %113 = vmatpush1.msra.mxu0 0.0
  %114 = vmatprep.subr.mxu0 0.0
  %115 = vmatpush1.msra.mxu0 0.0
  %116 = vmatprep.subr.mxu0 0.0
  %117 = vmatpush1.msra.mxu0 0.0
  %118 = vmatprep.subr.mxu0 0.0
  %119 = vmatpush1.msra.mxu0 0.0
  %120 = vmatprep.subr.mxu0 0.0
  %121 = vmatpush1.msra.mxu0 0.0
  %122 = vmatprep.subr.mxu0 0.0
  %123 = vmatpush1.msra.mxu0 0.0
  %124 = vmatprep.subr.mxu0 0.0
  %125 = vmatpush1.msra.mxu0 0.0
  %126 = vmatprep.subr.mxu0 0.0
  %127 = vmatpush1.msra.mxu0 0.0
  %128 = vmatprep.subr.mxu0 0.0
  %129 = vmatpush1.msra.mxu0 0.0
  %130 = vmatprep.subr.mxu0 0.0
  %131 = vmatpush1.msra.mxu0 0.0
  %132 = vmatprep.subr.mxu0 0.0
  %133 = vmatpush1.msra.mxu0 0.0
  %134 = vmatprep.subr.mxu0 0.0
  %135 = vmatpush1.msra.mxu0 0.0
  %136 = vmatprep.subr.mxu0 0.0
  %137 = vmatpush1.msra.mxu0 0.0
  %138 = vmatprep.subr.mxu0 0.0
  %139 = vmatpush1.msra.mxu0 0.0
  %140 = vmatprep.subr.mxu0 0.0
  %141 = vmatpush1.msra.mxu0 0.0
  %142 = vmatprep.subr.mxu0 0.0
  %143 = vmatpush1.msra.mxu0 0.0
  %144 = vmatprep.subr.mxu0 0.0
  %145 = vmatpush1.msra.mxu0 0.0
  %146 = vmatprep.subr.mxu0 0.0
  %147 = vmatpush1.msra.mxu0 0.0
  %148 = vmatprep.subr.mxu0 0.0
  %149 = vmatpush1.msra.mxu0 0.0
  %150 = vmatprep.subr.mxu0 0.0
  %151 = vmatpush1.msra.mxu0 0.0
  %152 = vmatprep.subr.mxu0 0.0
  %153 = vmatpush1.msra.mxu0 0.0
  %154 = vmatprep.subr.mxu0 0.0
  %155 = vmatpush1.msra.mxu0 0.0
  %156 = vmatprep.mubr.f32.mxu0 0.0
  %157 = vmatmul.mubr.f32.gmra.mrb[0].mxu0 %v85
  %v158 = vpop.f32.mrb[0].mxu0
  %v159 = vadd.f32 %v81, %v158
  %v160 = vpop.f32.mrb[0].mxu0
  %v161 = vadd.f32 %v81, %v160
  %162 = vdwg.mxu0
  %163 = vst [vmem:[%s3] sm:$0x7f] %v159
  %164 = vst [vmem:[%s3 + $0x8] sm:$0x7f] %v161
  %165 = vrot.lane.b32.xlu0 %v24, 127
  %v166 = vpop.permute.xlu0 %165
  %167 = vrot.lane.b32.xlu0 %v25, 127
  %v168 = vpop.permute.xlu0 %167
  %v169 = vsel %vm34, %v166, %v168
  %v170 = vsel %vm34, %v168, %v166
  %171 = vrot.lane.b32.xlu0 %v24, 112
  %v172 = vpop.permute.xlu0 %171
  %173 = vrot.lane.b32.xlu0 %v25, 112
  %v174 = vpop.permute.xlu0 %173
  %v175 = vsel %vm41, %v172, %v174
  %v176 = vsel %vm41, %v174, %v172
  %177 = vrot.lane.b32.xlu0 %v24, 111
  %v178 = vpop.permute.xlu0 %177
  %179 = vrot.lane.b32.xlu0 %v25, 111
  %v180 = vpop.permute.xlu0 %179
  %v181 = vsel %vm48, %v178, %v180
  %v182 = vsel %vm48, %v180, %v178
  %v185 = vrot.slane %v169, 3
  %v186 = vrot.slane %v170, 3
  %v191 = vrot.slane %v175, 6
  %v192 = vrot.slane %v176, 6
  %v197 = vrot.slane %v181, 1
  %v198 = vrot.slane %v182, 1
  %v201 = vsel %vm69, %v24, %v185
  %v202 = vsel %vm69, %v25, %v186
  %v203 = vsel %vm72, %v185, %v191
  %v204 = vsel %vm72, %v186, %v192
  %v205 = vsel %vm75, %v203, %v197
  %v206 = vsel %vm75, %v204, %v198
  %v207 = vsel %vm87, %v197, 0
  %v209 = vsel %vm87, %v198, 0
  %211 = vmatprep.subr.mxu0 %v202
  %212 = vmatpush1.msra.mxu0 %v201
  %213 = vmatprep.subr.mxu0 %v206
  %214 = vmatpush1.msra.mxu0 %v205
  %215 = vmatprep.subr.mxu0 %v209
  %216 = vmatpush1.msra.mxu0 %v207
  %217 = vmatprep.subr.mxu0 0.0
  %218 = vmatpush1.msra.mxu0 0.0
  %219 = vmatprep.subr.mxu0 0.0
  %220 = vmatpush1.msra.mxu0 0.0
  %221 = vmatprep.subr.mxu0 0.0
  %222 = vmatpush1.msra.mxu0 0.0
  %223 = vmatprep.subr.mxu0 0.0
  %224 = vmatpush1.msra.mxu0 0.0
  %225 = vmatprep.subr.mxu0 0.0
  %226 = vmatpush1.msra.mxu0 0.0
  %227 = vmatprep.subr.mxu0 0.0
  %228 = vmatpush1.msra.mxu0 0.0
  %229 = vmatprep.subr.mxu0 0.0
  %230 = vmatpush1.msra.mxu0 0.0
  %231 = vmatprep.subr.mxu0 0.0
  %232 = vmatpush1.msra.mxu0 0.0
  %233 = vmatprep.subr.mxu0 0.0
  %234 = vmatpush1.msra.mxu0 0.0
  %235 = vmatprep.subr.mxu0 0.0
  %236 = vmatpush1.msra.mxu0 0.0
  %237 = vmatprep.subr.mxu0 0.0
  %238 = vmatpush1.msra.mxu0 0.0
  %239 = vmatprep.subr.mxu0 0.0
  %240 = vmatpush1.msra.mxu0 0.0
  %241 = vmatprep.subr.mxu0 0.0
  %242 = vmatpush1.msra.mxu0 0.0
  %243 = vmatprep.subr.mxu0 0.0
  %244 = vmatpush1.msra.mxu0 0.0
  %245 = vmatprep.subr.mxu0 0.0
  %246 = vmatpush1.msra.mxu0 0.0
  %247 = vmatprep.subr.mxu0 0.0
  %248 = vmatpush1.msra.mxu0 0.0
  %249 = vmatprep.subr.mxu0 0.0
  %250 = vmatpush1.msra.mxu0 0.0
  %251 = vmatprep.subr.mxu0 0.0
  %252 = vmatpush1.msra.mxu0 0.0
  %253 = vmatprep.subr.mxu0 0.0
  %254 = vmatpush1.msra.mxu0 0.0
  %255 = vmatprep.subr.mxu0 0.0
  %256 = vmatpush1.msra.mxu0 0.0
  %257 = vmatprep.subr.mxu0 0.0
  %258 = vmatpush1.msra.mxu0 0.0
  %259 = vmatprep.subr.mxu0 0.0
  %260 = vmatpush1.msra.mxu0 0.0
  %261 = vmatprep.subr.mxu0 0.0
  %262 = vmatpush1.msra.mxu0 0.0
  %263 = vmatprep.subr.mxu0 0.0
  %264 = vmatpush1.msra.mxu0 0.0
  %265 = vmatprep.subr.mxu0 0.0
  %266 = vmatpush1.msra.mxu0 0.0
  %267 = vmatprep.subr.mxu0 0.0
  %268 = vmatpush1.msra.mxu0 0.0
  %269 = vmatprep.subr.mxu0 0.0
  %270 = vmatpush1.msra.mxu0 0.0
  %271 = vmatprep.subr.mxu0 0.0
  %272 = vmatpush1.msra.mxu0 0.0
  %273 = vmatprep.subr.mxu0 0.0
  %274 = vmatpush1.msra.mxu0 0.0
  %275 = vmatprep.mubr.f32.mxu0 0.0
  %276 = vmatmul.mubr.f32.gmra.mrb[0].mxu0 %v85
  %v277 = vpop.f32.mrb[0].mxu0
  %v278 = vadd.f32 %v81, %v277
  %v279 = vpop.f32.mrb[0].mxu0
  %v280 = vadd.f32 %v81, %v279
  %281 = vdwg.mxu0
  %s282 = scalar_lea.vmem %s3, 16
  %283 = vst [vmem:[%s282] sm:$0x7f] %v278
  %284 = vst [vmem:[%s282 + $0x8] sm:$0x7f] %v280
  // Predicated region
  $region14: #{tpu_custom_call.1} parent=0 // pred_check
    _
  $region15: #{tpu_custom_call.1} parent=0 // pred_check_branch
    %286 = sbr.rel (0) target = $region17
  $region16: #{tpu_custom_call.1} parent=0 // pred_region
    _
  $region17: #{tpu_custom_call.1} parent=0 // pred_fallthru
    _
  // Predicated region
  $region18: #{tpu_custom_call.1} parent=0 // pred_check
    _
  $region19: #{tpu_custom_call.1} parent=0 // pred_check_branch
    %288 = sbr.rel (0) target = $region21
  $region20: #{tpu_custom_call.1} parent=0 // pred_region
    _
  $region21: #{tpu_custom_call.1} parent=0 // pred_fallthru
    _

</llo_original>
